<compile_context>
chip_gen: v7x
topology: tpu7x:2x2x1
jax: 0.10.0
libtpu: 0.0.40
codegen_flags: <defaults>
</compile_context>

<pallas_src>
import jax
import jax.numpy as jnp
from jax.experimental import pallas as pl
from jax.experimental.pallas import tpu as pltpu

DEGREE_P = 5                        # numerator polynomial degree -> 6 coefficients
BUFFER_BYTES = 8 * 1024 * 1024      # per-VMEM-buffer byte budget (~8 MiB)
VMEM_LIMIT_BYTES = 48 * 1024 * 1024 # 4 x 8 MiB buffers fit; < v7x 64 MiB physical
MIN_ROWS_FOR_SPLIT = 64             # above this, force >=2 grid steps (v7x megacore)


def _taylor_kernel(a_ref, x_ref, o_ref):
    """Evaluate p(x) via Horner's scheme on one VMEM tile.

    a_ref : SMEM (DEGREE_P+1,) float32 coefficients (scalar-prefetched)
    x_ref : VMEM (block_rows, width) input tile (original dtype)
    o_ref : VMEM (block_rows, width) output tile (original dtype)

    Note: when rows % block_rows != 0 the last block reads past the array.
    The garbage lanes may produce inf/nan in `acc`, but Pallas masks the OOB
    writes so results are correct.  Do NOT add any reduction / read-back of
    `acc` without masking those lanes first.
    """
    x = x_ref[...].astype(jnp.float32)          # cast in-register, f32 math
    # Horner with the init folded into the first FMA: ((a5*x + a4)*x + ...)*x + a0
    acc = x * a_ref[DEGREE_P] + a_ref[DEGREE_P - 1]
    for i in range(DEGREE_P - 2, -1, -1):
        acc = acc * x + a_ref[i]
    o_ref[...] = acc.astype(o_ref.dtype)


def _round_up(v, m):
    return ((v + m - 1) // m) * m


def _choose_width(n):
    """Largest lane-dense width (multiple of 128) that divides n exactly."""
    for w in (1024, 512, 256, 128):
        if n % w == 0:
            return w
    return None


def _choose_block_rows(rows, width, itemsize):
    """Row count per block: ~8 MiB/buffer, sublane-aligned, >=2 balanced steps."""
    # Sublane packing multiple: 8 for 4-byte dtypes, 16 for 2-byte, 32 for 1-byte.
    sub = 8 * max(1, 4 // itemsize)
    budget_rows = max(sub, (BUFFER_BYTES // (width * itemsize)) // sub * sub)
    if rows <= MIN_ROWS_FOR_SPLIT:
        # Tiny input: single block equal to the full row extent (always legal).
        return rows
    # Guarantee at least 2 balanced grid steps so ("parallel",) shards the
    # stream across both TensorCores on v7x; otherwise use the byte-budget tile.
    half = _round_up((rows + 1) // 2, sub)
    return min(budget_rows, half)


def _taylor_bulk(x2d, a32, out_dtype):
    """Run the Pallas kernel over a lane-dense (rows, width) slab."""
    rows, width = x2d.shape
    block_rows = _choose_block_rows(rows, width, x2d.dtype.itemsize)
    grid = (pl.cdiv(rows, block_rows),)

    return pl.pallas_call(
        _taylor_kernel,
        out_shape=jax.ShapeDtypeStruct((rows, width), out_dtype),
        grid_spec=pltpu.PrefetchScalarGridSpec(
            num_scalar_prefetch=1,          # coefficients land in SMEM
            grid=grid,
            in_specs=[
                # If xprof ever shows exposed input DMA on v7x, try
                # pipeline_mode=pl.Buffered(3) here (VMEM headroom exists).
                pl.BlockSpec((block_rows, width), lambda i, a_ref: (i, 0)),
            ],
            out_specs=pl.BlockSpec((block_rows, width), lambda i, a_ref: (i, 0)),
        ),
        compiler_params=pltpu.CompilerParams(
            dimension_semantics=("parallel",),      # shards grid across TCs on v7x
            vmem_limit_bytes=VMEM_LIMIT_BYTES,
        ),
    )(a32, x2d)


def _taylor_jnp(xf32, a32):
    """Fused single-pass Horner in plain jnp (fallback for ragged n)."""
    acc = xf32 * a32[DEGREE_P] + a32[DEGREE_P - 1]
    for i in range(DEGREE_P - 2, -1, -1):
        acc = acc * xf32 + a32[i]
    return acc


def taylor_function(x, a):
    """Apply the Taylor/rational activation elementwise.

    x : arbitrary-shaped array (e.g. NCHW), any float dtype
    a : (DEGREE_P+1,) coefficients
    """
    orig_shape = x.shape
    orig_dtype = x.dtype
    a32 = a.astype(jnp.float32)

    n = x.size
    if n == 0:
        return x

    width = _choose_width(n)
    if width is None:
        # n not a multiple of 128: a lane-dense slab can't be formed without a
        # padding/concat pass.  A fused XLA elementwise Horner is already
        # one-read/one-write streaming, so it beats Pallas-bulk + concat here.
        return _taylor_jnp(x.astype(jnp.float32), a32).astype(orig_dtype)

    x2d = x.reshape(n // width, width)              # contiguous reshape, no copy
    out2d = _taylor_bulk(x2d, a32, orig_dtype)
    return out2d.reshape(orig_shape)


def taylor_function_ref(x, a):
    """Pure-JAX reference mirroring the PyTorch forward (power-sum form)."""
    p = jnp.zeros_like(x, dtype=jnp.float32)
    xf = x.astype(jnp.float32)
    for i in range(DEGREE_P + 1):
        p = p + a[i].astype(jnp.float32) * xf ** i
    return p.astype(x.dtype)


if __name__ == "__main__":
    key = jax.random.PRNGKey(0)
    k_x, k_a = jax.random.split(key)

    # Small NCHW input consistent with a conv-style activation usage.
    x = jax.random.normal(k_x, (2, 4, 16, 16), dtype=jnp.float32)
    # Deterministic "randn" coefficients (module's nn.Parameter(torch.randn(6))).
    a = jax.random.normal(k_a, (DEGREE_P + 1,), dtype=jnp.float32)

    out = taylor_function(x, a)
    out = jax.block_until_ready(out)

    ref = taylor_function_ref(x, a)
    assert out.shape == x.shape and out.dtype == x.dtype
    assert jnp.allclose(out, ref, rtol=1e-4, atol=1e-5), "mismatch vs reference"

    print("KERNEL_OK")
</pallas_src>

<mosaic_0001>
module attributes {stable_mosaic.version = 11 : i64} {
  func.func @_taylor_kernel(%arg0: i32, %arg1: memref<6xf32, #tpu.memory_space<smem>>, %arg2: memref<2x1024xf32, #tpu.memory_space<vmem>>, %arg3: memref<2x1024xf32, #tpu.memory_space<vmem>>) attributes {dimension_semantics = [#tpu.dimension_semantics<parallel>], iteration_bounds = array<i64: 1>, scalar_prefetch = 1 : i64, scratch_operands = 0 : i64, tpu.core_type = #tpu.core_type<tc>, window_params = [{transform_indices = @transform_0, window_bounds = array<i64: 2, 1024>}, {transform_indices = @transform_1, window_bounds = array<i64: 2, 1024>}]} {
    %c0 = arith.constant 0 : index
    %c0_0 = arith.constant 0 : index
    %0 = vector.load %arg2[%c0, %c0_0] : memref<2x1024xf32, #tpu.memory_space<vmem>>, vector<2x1024xf32>
    %c5 = arith.constant 5 : index
    %1 = memref.load %arg1[%c5] : memref<6xf32, #tpu.memory_space<smem>>
    %2 = vector.broadcast %1 : f32 to vector<2x1024xf32>
    %3 = arith.mulf %0, %2 : vector<2x1024xf32>
    %c4 = arith.constant 4 : index
    %4 = memref.load %arg1[%c4] : memref<6xf32, #tpu.memory_space<smem>>
    %5 = vector.broadcast %4 : f32 to vector<2x1024xf32>
    %6 = arith.addf %3, %5 : vector<2x1024xf32>
    %7 = arith.mulf %6, %0 : vector<2x1024xf32>
    %c3 = arith.constant 3 : index
    %8 = memref.load %arg1[%c3] : memref<6xf32, #tpu.memory_space<smem>>
    %9 = vector.broadcast %8 : f32 to vector<2x1024xf32>
    %10 = arith.addf %7, %9 : vector<2x1024xf32>
    %11 = arith.mulf %10, %0 : vector<2x1024xf32>
    %c2 = arith.constant 2 : index
    %12 = memref.load %arg1[%c2] : memref<6xf32, #tpu.memory_space<smem>>
    %13 = vector.broadcast %12 : f32 to vector<2x1024xf32>
    %14 = arith.addf %11, %13 : vector<2x1024xf32>
    %15 = arith.mulf %14, %0 : vector<2x1024xf32>
    %c1 = arith.constant 1 : index
    %16 = memref.load %arg1[%c1] : memref<6xf32, #tpu.memory_space<smem>>
    %17 = vector.broadcast %16 : f32 to vector<2x1024xf32>
    %18 = arith.addf %15, %17 : vector<2x1024xf32>
    %19 = arith.mulf %18, %0 : vector<2x1024xf32>
    %c0_1 = arith.constant 0 : index
    %20 = memref.load %arg1[%c0_1] : memref<6xf32, #tpu.memory_space<smem>>
    %21 = vector.broadcast %20 : f32 to vector<2x1024xf32>
    %22 = arith.addf %19, %21 : vector<2x1024xf32>
    %c0_2 = arith.constant 0 : index
    %c0_3 = arith.constant 0 : index
    %23 = vector.load %arg3[%c0_2, %c0_3] : memref<2x1024xf32, #tpu.memory_space<vmem>>, vector<2x1024xf32>
    tpu.vector_store %arg3[%c0_2, %c0_3], %22 {strides = array<i32>} : memref<2x1024xf32, #tpu.memory_space<vmem>>, vector<2x1024xf32>,
    return
  }
  func.func @transform_0(%arg0: i32, %arg1: memref<6xf32, #tpu.memory_space<smem>>) -> (i32, i32) {
    %c0_i32 = arith.constant 0 : i32
    %c0_i32_0 = arith.constant 0 : i32
    return %arg0, %c0_i32 : i32, i32
  }
  func.func @transform_1(%arg0: i32, %arg1: memref<6xf32, #tpu.memory_space<smem>>) -> (i32, i32) {
    %c0_i32 = arith.constant 0 : i32
    %c0_i32_0 = arith.constant 0 : i32
    return %arg0, %c0_i32 : i32, i32
  }
}

</mosaic_0001>

<llo_original>
// kernel: tpu_custom_call.1
$region0: #{tpu_custom_call.1}
  #allocation0 [shape = 'u32[]', space=smem, size = 0x4, offset = 0x4, fixed_abs, tag = 'smem constant byte address 0x4 - core index']
  #allocation1 [shape = 'u32[144,128]{1,0:T(1,128)}', space=vmem, size = 0x12000, scoped, tag = 'internal scratch']
  #allocation2 [shape = 's32[1]{0}', space=sflag, size = 0x4, scoped, tag = 'scoped memory for tpu_custom_call.1']
  #allocation3 [shape = 'u8[512]{0}', space=smem, size = 0x200, scoped, tag = 'prefetched SMEM operand 0']
  %s0 = inlined_call_operand.hbm [shape: f32[6], index: 0, kind: input, shape index: {}]
  %s1 = inlined_call_operand.hbm [shape: f32[2,1024], index: 1, kind: input, shape index: {}]
  %s2 = inlined_call_operand.hbm [shape: f32[2,1024], index: 2, kind: output, shape index: {}]
  %s3 = sld [smem:[#allocation0]]
  $region18: #{tpu_custom_call.1} parent=0
    _
  %s5 = ssub.s32 1, %s3
  %s6 = scalar_select 0, %s5, %s3
  %8 = dma.hbm_to_smem %s0, 16, [#allocation3], [#allocation2]
  %9 = dma.done [#allocation2], 16
  %10 = sfence
  $region1: #{tpu_custom_call.1} parent=0
    #allocation4 [shape = 'u8[8192]{0}', space=vmem, size = 0x2000, scoped, tag = 'input window, operand 1, single buffered']
    #allocation5 [shape = 's32[1]{0}', space=sflag, size = 0x4, scoped, tag = 'scoped memory for tpu_custom_call.1']
    #allocation6 [shape = 's32[1]{0}', space=sflag, size = 0x4, scoped, tag = 'scoped memory for tpu_custom_call.1']
    #allocation7 [shape = 'u8[8192]{0}', space=vmem, size = 0x2000, scoped, tag = 'output window, operand 0, single buffered']
    %11 = vsyncpa [#allocation5], 0
    %12 = vsyncpa [#allocation6], 0
    // Predicated region
    $region2: #{tpu_custom_call.1} parent=1 // pred_check
      _
    $region3: #{tpu_custom_call.1} parent=1 // pred_check_branch
      %14 = sbr.rel (0) target = $region5
    $region4: #{tpu_custom_call.1} parent=1 // pred_region
      %s16 = ssub.s32 256, 256
      %17 = vsyncadd [#allocation5], %s16
      %s19 = sshll.u32 [#allocation4], 4
      %s20 = int_to_ptr.vmem [resolvable:$true] %s19
      %22 = dma.hbm_to_vmem [thread:$0]  %s1, 256, %s20, [#allocation5]
    $region5: #{tpu_custom_call.1} parent=1 // pred_fallthru
      _
    // Predicated region
    $region6: #{tpu_custom_call.1} parent=1 // pred_check
      _
    $region7: #{tpu_custom_call.1} parent=1 // pred_check_branch
      %24 = sbr.rel (0) target = $region9
    $region8: #{tpu_custom_call.1} parent=1 // pred_region
      %25 = dma.done [#allocation5], 256
    $region9: #{tpu_custom_call.1} parent=1 // pred_fallthru
      _
    %v26 = vld [vmem:[#allocation4] sm:$0xff]
    %v27 = vld [vmem:[#allocation4 + $0x8] sm:$0xff]
    %s28 = sld [smem:[#allocation3 + $0x5]]
    %v29 = vstv %s28
    %v30 = vmul.f32 %v26, %v29
    %v31 = vmul.f32 %v27, %v29
    %s32 = sld [smem:[#allocation3 + $0x4]]
    %v33 = vstv %s32
    %v34 = vadd.f32 %v30, %v33
    %v35 = vadd.f32 %v31, %v33
    %v36 = vmul.f32 %v34, %v26
    %v37 = vmul.f32 %v35, %v27
    %s38 = sld [smem:[#allocation3 + $0x3]]
    %v39 = vstv %s38
    %v40 = vadd.f32 %v36, %v39
    %v41 = vadd.f32 %v37, %v39
    %v42 = vmul.f32 %v40, %v26
    %v43 = vmul.f32 %v41, %v27
    %s44 = sld [smem:[#allocation3 + $0x2]]
    %v45 = vstv %s44
    %v46 = vadd.f32 %v42, %v45
    %v47 = vadd.f32 %v43, %v45
    %v48 = vmul.f32 %v46, %v26
    %v49 = vmul.f32 %v47, %v27
    %s50 = sld [smem:[#allocation3 + $0x1]]
    %v51 = vstv %s50
    %v52 = vadd.f32 %v48, %v51
    %v53 = vadd.f32 %v49, %v51
    %v54 = vmul.f32 %v52, %v26
    %v55 = vmul.f32 %v53, %v27
    %s56 = sld [smem:[#allocation3]]
    %v57 = vstv %s56
    %v58 = vadd.f32 %v54, %v57
    %v59 = vadd.f32 %v55, %v57
    %60 = vst [vmem:[#allocation7] sm:$0xff] %v58
    %61 = vst [vmem:[#allocation7 + $0x8] sm:$0xff] %v59
    // Predicated region
    $region10: #{tpu_custom_call.1} parent=1 // pred_check
      _
    $region11: #{tpu_custom_call.1} parent=1 // pred_check_branch
      %63 = sbr.rel (0) target = $region13
    $region12: #{tpu_custom_call.1} parent=1 // pred_region
      %s65 = ssub.s32 256, 256
      %66 = vsyncadd [#allocation6], %s65
      %s68 = sshll.u32 [#allocation7], 4
      %s69 = int_to_ptr.vmem [resolvable:$true] %s68
      %71 = dma.vmem_to_hbm [thread:$0]  %s69, 256, %s2, [#allocation6]
    $region13: #{tpu_custom_call.1} parent=1 // pred_fallthru
      _
    // Predicated region
    $region14: #{tpu_custom_call.1} parent=1 // pred_check
      _
    $region15: #{tpu_custom_call.1} parent=1 // pred_check_branch
      %73 = sbr.rel (0) target = $region17
    $region16: #{tpu_custom_call.1} parent=1 // pred_region
      %74 = dma.done [#allocation6], 256
    $region17: #{tpu_custom_call.1} parent=1 // pred_fallthru
      _
    %75 = vsyncpa [#allocation5], 1
    %76 = vsyncpa [#allocation6], 1

</llo_original>
